<compile_context>
chip_gen: v7x
topology: tpu7x:2x2x1
jax: 0.10.0
libtpu: 0.0.40
codegen_flags: <defaults>
</compile_context>

<pallas_src>
import functools

import jax
import jax.numpy as jnp
from jax.experimental import pallas as pl
from jax.experimental.pallas import tpu as pltpu

LANE = 128
SUBLANE = 8
INT8_SUBLANE = 32  # int8 packs 4 rows per 32-bit sublane -> tiles of (32, 128)


def _round_up(x, m):
    return (x + m - 1) // m * m


# --------------------------- tile / VMEM planning ---------------------------

def _pick_tile_and_limits(n_p, f_p, h_p, o_p, out_itemsize, requested=None):
    """Choose the row-tile TM + vmem limit with full, generation-aware VMEM
    accounting (A stream + bf16 cast temp + resident x/W/b + out + temps)."""
    try:
        vmem_cap = int(pltpu.get_tpu_info().vmem_capacity_bytes)
    except Exception:  # be conservative if the query is unavailable
        vmem_cap = 64 << 20                     # v7x-class VMEM
    vmem_limit = min(vmem_cap * 3 // 4, 100 << 20)   # ~48 MiB v7x, ~96 MiB v5e/v6e
    budget = int(vmem_limit * 0.85)                  # headroom for Mosaic scratch

    def layer_bytes(tm, fin, fout, o_bytes):
        a_stream = 2 * tm * n_p * 1            # double-buffered int8 A row tile
        a_cast = tm * n_p * 2                  # in-kernel bf16 cast temp
        inv_deg = 2 * tm * 4
        x_res = 2 * n_p * fin * 2              # resident x (double-buffered)
        weights = 2 * 2 * fin * fout * 2       # W_l + W_r
        bias = 2 * fout * 4
        out_t = 2 * tm * fout * o_bytes
        temps = tm * fin * 4 + 2 * tm * fout * 4
        return a_stream + a_cast + inv_deg + x_res + weights + bias + out_t + temps

    def fits(tm):
        return max(layer_bytes(tm, f_p, h_p, 2),
                   layer_bytes(tm, h_p, o_p, out_itemsize)) <= budget

    cap = requested if requested is not None else 512
    cap = min(cap, max(n_p // 2, INT8_SUBLANE))   # guarantee >=2 row blocks (megacore)
    candidates = [t for t in (512, 256, 128, 64, 32)
                  if t <= cap and n_p % t == 0]
    if not candidates:                            # tiny request -> force int8-legal tile
        candidates = [INT8_SUBLANE]
    tm = candidates[-1]
    for t in candidates:                          # largest tile that fits the budget
        if fits(t):
            tm = t
            break
    return tm, vmem_limit, budget


def _fused_fits(n_p, f_p, h_p, o_p, budget):
    """Can A (resident), x, weights, h1 and temps all live in VMEM at once?"""
    total = (2 * n_p * n_p * 1                      # A int8 (double-buffer worst case)
             + n_p * n_p * 2                        # bf16 cast of A
             + 2 * n_p * f_p * 2 + 2 * n_p * 4      # x, 1/deg
             + 2 * 2 * (f_p * h_p + h_p * o_p) * 2  # stacked weights
             + 2 * n_p * o_p * 4                    # f32 output
             + n_p * h_p * 2                        # h1 (bf16)
             + 2 * n_p * max(f_p, h_p) * 4)         # f32 agg / h temps
    return total <= budget


# ------------------------------ Pallas kernels ------------------------------

def sage_layer_kernel(a_ref, inv_deg_ref, x_full_ref, wl_ref, wr_ref, b_ref,
                      out_ref, *, apply_relu):
    """One SAGEConv layer for a TM-row block of nodes.

    a_ref       : [TM, Np] int8  un-normalized adjacency rows (edge counts)
    inv_deg_ref : [TM, 1]  f32   1/deg(i) row scale ('mean' aggregation)
    x_full_ref  : [Np, F]  bf16  all node features (resident, aggregation RHS)
    wl_ref      : [F, H]   bf16  neighbor weight (lin_l)
    wr_ref      : [F, H]   bf16  root/self weight (lin_r)
    b_ref       : [1, H]   f32
    out_ref     : [TM, H]
    """
    tm = out_ref.shape[0]
    row0 = pl.multiple_of(pl.program_id(0) * tm, tm)
    x_blk = x_full_ref[pl.ds(row0, tm), :]                 # own rows, already in VMEM

    # int8 -> bf16 cast (VPU, hidden under MXU), then mean aggregation.
    a = a_ref[...].astype(jnp.bfloat16)                    # [TM, Np]
    agg = jnp.dot(a, x_full_ref[...],
                  preferred_element_type=jnp.float32)      # [TM, F] f32
    agg = agg * inv_deg_ref[...]                           # per-row 1/deg scale

    # SAGE: lin_l(mean_agg) + lin_r(x_self) + bias   (two dots, no concat temp)
    h = jnp.dot(agg.astype(jnp.bfloat16), wl_ref[...],
                preferred_element_type=jnp.float32)
    h = h + jnp.dot(x_blk, wr_ref[...], preferred_element_type=jnp.float32)
    h = h + b_ref[...]
    if apply_relu:
        h = jnp.maximum(h, 0.0)
    out_ref[...] = h.astype(out_ref.dtype)


def sage_fused_kernel(a_ref, inv_deg_ref, x_ref, wl1_ref, wr1_ref, b1_ref,
                      wl2_ref, wr2_ref, b2_ref, out_ref):
    """Both SAGEConv layers fused; everything resident in VMEM (small graphs)."""
    a = a_ref[...].astype(jnp.bfloat16)
    inv_deg = inv_deg_ref[...]

    # layer 1 + ReLU
    agg1 = jnp.dot(a, x_ref[...], preferred_element_type=jnp.float32) * inv_deg
    h = jnp.dot(agg1.astype(jnp.bfloat16), wl1_ref[...],
                preferred_element_type=jnp.float32)
    h = h + jnp.dot(x_ref[...], wr1_ref[...], preferred_element_type=jnp.float32)
    h = jnp.maximum(h + b1_ref[...], 0.0).astype(jnp.bfloat16)   # [Np, H] bf16
    # F.dropout(training=False) is the identity at inference time.

    # layer 2 (padded rows of h are garbage, but the matching A columns are zero
    # and padded output rows are sliced off in the wrapper).
    agg2 = jnp.dot(a, h, preferred_element_type=jnp.float32) * inv_deg
    o = jnp.dot(agg2.astype(jnp.bfloat16), wl2_ref[...],
                preferred_element_type=jnp.float32)
    o = o + jnp.dot(h, wr2_ref[...], preferred_element_type=jnp.float32)
    out_ref[...] = (o + b2_ref[...]).astype(out_ref.dtype)


# ------------------------------ layer wrappers ------------------------------

def _sage_layer(a, inv_deg, x, w_l, w_r, b, *, block_rows, apply_relu,
                out_dtype, vmem_limit):
    n_p = a.shape[0]
    f = x.shape[1]
    h = w_l.shape[1]
    tm = block_rows
    grid = (n_p // tm,)

    cost = pl.CostEstimate(
        flops=2 * n_p * n_p * f + 4 * n_p * f * h,
        transcendentals=0,
        bytes_accessed=(a.size * 1 + inv_deg.size * 4 + x.size * 2
                        + (w_l.size + w_r.size) * 2 + b.size * 4
                        + n_p * h * jnp.dtype(out_dtype).itemsize),
    )

    kernel = functools.partial(sage_layer_kernel, apply_relu=apply_relu)
    # TODO(synk): mark the grid-invariant residents (x, W, b) single-buffered
    # via pipeline_mode=pl.Buffered(1) once confirmed supported; the VMEM
    # planner above conservatively assumes they are double-buffered.
    return pl.pallas_call(
        kernel,
        out_shape=jax.ShapeDtypeStruct((n_p, h), out_dtype),
        grid=grid,
        in_specs=[
            pl.BlockSpec((tm, n_p), lambda i: (i, 0)),    # A row tile (int8 stream)
            pl.BlockSpec((tm, 1), lambda i: (i, 0)),      # 1/deg for these rows
            pl.BlockSpec((n_p, f), lambda i: (0, 0)),     # full x (resident)
            pl.BlockSpec((f, h), lambda i: (0, 0)),       # W_l
            pl.BlockSpec((f, h), lambda i: (0, 0)),       # W_r
            pl.BlockSpec((1, h), lambda i: (0, 0)),       # bias
        ],
        out_specs=pl.BlockSpec((tm, h), lambda i: (i, 0)),
        compiler_params=pltpu.CompilerParams(
            dimension_semantics=("parallel",),            # 2 TensorCores on v7x
            vmem_limit_bytes=vmem_limit,
        ),
        cost_estimate=cost,
    )(a, inv_deg, x, w_l, w_r, b)


def _sage_fused(a, inv_deg, x, wl1, wr1, b1, wl2, wr2, b2, *, vmem_limit):
    n_p = a.shape[0]
    f_p, h_p, o_p = x.shape[1], wl1.shape[1], wl2.shape[1]
    cost = pl.CostEstimate(
        flops=2 * n_p * n_p * (f_p + h_p) + 4 * n_p * (f_p * h_p + h_p * o_p),
        transcendentals=0,
        bytes_accessed=(a.size + inv_deg.size * 4 + x.size * 2
                        + (wl1.size + wr1.size + wl2.size + wr2.size) * 2
                        + (b1.size + b2.size) * 4 + n_p * o_p * 4),
    )
    return pl.pallas_call(
        sage_fused_kernel,
        out_shape=jax.ShapeDtypeStruct((n_p, o_p), jnp.float32),
        compiler_params=pltpu.CompilerParams(vmem_limit_bytes=vmem_limit),
        cost_estimate=cost,
    )(a, inv_deg, x, wl1, wr1, b1, wl2, wr2, b2)


# ------------------------------ JAX wrapper ---------------------------------

def prepare_graph(edge_index, n_p):
    """Dense lowering of the sparse graph: int8 edge counts + f32 1/deg.

    For a static graph, call this once and reuse (a, inv_deg) across forwards.
    TODO(synk): for large sparse graphs switch to a CSR/neighbor-list design
    with PrefetchScalarGridSpec instead of the O(N^2) dense adjacency.
    """
    src, dst = edge_index[0], edge_index[1]
    counts = jnp.zeros((n_p, n_p), jnp.float32).at[dst, src].add(1.0)
    deg = counts.sum(axis=1, keepdims=True)
    inv_deg = (1.0 / jnp.clip(deg, 1.0, None)).astype(jnp.float32)   # [n_p, 1]
    # TODO(synk): int8 saturates for edge multiplicity > 127 (never happens for
    # simple / lightly-multi graphs); 1/deg uses the exact unclipped degrees.
    a = jnp.clip(counts, 0.0, 127.0).astype(jnp.int8)
    return a, inv_deg


def gnn_encoder(x, edge_index, params, *, block_rows=None, force_tiled=False):
    """Equivalent of GNNEncoder.forward(x, edge_index) in eval mode."""
    n, f = x.shape
    wl1, wr1, b1, wl2, wr2, b2 = params
    h_dim = wl1.shape[1]
    o_dim = wl2.shape[1]

    # lane-dense padded widths; N padded to a lane multiple so TM divides it.
    f_p = _round_up(f, LANE)
    h_p = _round_up(h_dim, LANE)
    o_p = _round_up(o_dim, LANE)
    n_p = _round_up(n, LANE)

    tm, vmem_limit, budget = _pick_tile_and_limits(
        n_p, f_p, h_p, o_p, 4, requested=block_rows)

    a, inv_deg = prepare_graph(edge_index, n_p)

    def pad2(w, rows, cols):
        return jnp.zeros((rows, cols), jnp.float32).at[:w.shape[0], :w.shape[1]].set(w)

    x_p = jnp.zeros((n_p, f_p), jnp.bfloat16).at[:n, :f].set(x.astype(jnp.bfloat16))
    wl1p = pad2(wl1, f_p, h_p).astype(jnp.bfloat16)
    wr1p = pad2(wr1, f_p, h_p).astype(jnp.bfloat16)
    wl2p = pad2(wl2, h_p, o_p).astype(jnp.bfloat16)
    wr2p = pad2(wr2, h_p, o_p).astype(jnp.bfloat16)
    b1p = pad2(b1, 1, h_p)
    b2p = pad2(b2, 1, o_p)

    if (not force_tiled) and _fused_fits(n_p, f_p, h_p, o_p, budget):
        # Small graph: one launch, A streamed from HBM once, h1 stays on-chip.
        out = _sage_fused(a, inv_deg, x_p, wl1p, wr1p, b1p, wl2p, wr2p, b2p,
                          vmem_limit=vmem_limit)
    else:
        # layer 1: relu(SAGEConv)
        h1 = _sage_layer(a, inv_deg, x_p, wl1p, wr1p, b1p,
                         block_rows=tm, apply_relu=True,
                         out_dtype=jnp.bfloat16, vmem_limit=vmem_limit)
        # F.dropout(training=False) is the identity at inference time.
        # TODO(synk): training-mode dropout would use pltpu.prng_seed/prng_random_bits.
        # layer 2: SAGEConv (no activation)
        out = _sage_layer(a, inv_deg, h1, wl2p, wr2p, b2p,
                          block_rows=tm, apply_relu=False,
                          out_dtype=jnp.float32, vmem_limit=vmem_limit)
    return out[:n, :o_dim]


def init_params(key, in_channels, hidden_channels, out_channels):
    """Deterministic SAGEConv params (stored pre-transposed: [in, out])."""
    ks = jax.random.split(key, 6)
    s1 = 1.0 / jnp.sqrt(in_channels)
    s2 = 1.0 / jnp.sqrt(hidden_channels)
    wl1 = jax.random.uniform(ks[0], (in_channels, hidden_channels), jnp.float32, -s1, s1)
    wr1 = jax.random.uniform(ks[1], (in_channels, hidden_channels), jnp.float32, -s1, s1)
    b1 = jax.random.uniform(ks[2], (1, hidden_channels), jnp.float32, -s1, s1)
    wl2 = jax.random.uniform(ks[3], (hidden_channels, out_channels), jnp.float32, -s2, s2)
    wr2 = jax.random.uniform(ks[4], (hidden_channels, out_channels), jnp.float32, -s2, s2)
    b2 = jax.random.uniform(ks[5], (1, out_channels), jnp.float32, -s2, s2)
    return (wl1, wr1, b1, wl2, wr2, b2)


# ------------------------------ pure-JAX ref --------------------------------

def gnn_encoder_ref(x, edge_index, params):
    n = x.shape[0]
    src, dst = edge_index[0], edge_index[1]
    adj = jnp.zeros((n, n), jnp.float32).at[dst, src].add(1.0)
    deg = jnp.clip(adj.sum(axis=1, keepdims=True), 1.0, None)
    a = adj / deg
    wl1, wr1, b1, wl2, wr2, b2 = params
    h1 = jnp.maximum((a @ x) @ wl1 + b1 + x @ wr1, 0.0)
    return (a @ h1) @ wl2 + b2 + h1 @ wr2


# --------------------------------- main --------------------------------------

if __name__ == "__main__":
    key = jax.random.PRNGKey(0)
    k_x, k_e, k_p = jax.random.split(key, 3)

    num_nodes = 64
    num_edges = 256
    in_channels = 16
    hidden_channels = 32
    out_channels = 8

    x = jax.random.normal(k_x, (num_nodes, in_channels), jnp.float32)
    edge_index = jax.random.randint(k_e, (2, num_edges), 0, num_nodes, jnp.int32)
    params = init_params(k_p, in_channels, hidden_channels, out_channels)

    ref = gnn_encoder_ref(x, edge_index, params)

    # Small graph -> fused single-kernel path (A resident, one launch).
    out = gnn_encoder(x, edge_index, params)
    out = jax.block_until_ready(out)
    assert out.shape == (num_nodes, out_channels)
    # bf16 matmul operands (f32 accumulation) -> looser tolerance than pure f32.
    assert jnp.allclose(out, ref, atol=5e-2, rtol=5e-2)

    # Also exercise the row-tiled two-kernel pipeline path (grid >= 2 blocks).
    out_tiled = jax.block_until_ready(
        gnn_encoder(x, edge_index, params, force_tiled=True))
    assert jnp.allclose(out_tiled, ref, atol=5e-2, rtol=5e-2)

    print("KERNEL_OK")
</pallas_src>

<mosaic_0001>
module attributes {stable_mosaic.version = 11 : i64} {
  func.func @sage_fused_kernel(%arg0: memref<128x128xi8, #tpu.memory_space<vmem>>, %arg1: memref<128x1xf32, #tpu.memory_space<vmem>>, %arg2: memref<128x128xbf16, #tpu.memory_space<vmem>>, %arg3: memref<128x128xbf16, #tpu.memory_space<vmem>>, %arg4: memref<128x128xbf16, #tpu.memory_space<vmem>>, %arg5: memref<1x128xf32, #tpu.memory_space<vmem>>, %arg6: memref<128x128xbf16, #tpu.memory_space<vmem>>, %arg7: memref<128x128xbf16, #tpu.memory_space<vmem>>, %arg8: memref<1x128xf32, #tpu.memory_space<vmem>>, %arg9: memref<128x128xf32, #tpu.memory_space<vmem>>) attributes {dimension_semantics = [], scalar_prefetch = 0 : i64, scratch_operands = 0 : i64, tpu.core_type = #tpu.core_type<tc>} {
    %c0 = arith.constant 0 : index
    %c0_0 = arith.constant 0 : index
    %0 = vector.load %arg0[%c0, %c0_0] : memref<128x128xi8, #tpu.memory_space<vmem>>, vector<128x128xi8>
    %1 = arith.sitofp %0 : vector<128x128xi8> to vector<128x128xbf16>
    %c0_1 = arith.constant 0 : index
    %c0_2 = arith.constant 0 : index
    %2 = vector.load %arg1[%c0_1, %c0_2] : memref<128x1xf32, #tpu.memory_space<vmem>>, vector<128x1xf32>
    %c0_3 = arith.constant 0 : index
    %c0_4 = arith.constant 0 : index
    %3 = vector.load %arg2[%c0_3, %c0_4] : memref<128x128xbf16, #tpu.memory_space<vmem>>, vector<128x128xbf16>
    %cst = arith.constant dense<0.000000e+00> : vector<128x128xf32>
    %4 = tpu.matmul %1, %3, %cst {dimension_numbers = #tpu.dot_dimension_numbers<[1], [0], [0], [1], [0, 0, 1, 1], [], []>} : vector<128x128xbf16>, vector<128x128xbf16>, vector<128x128xf32> -> vector<128x128xf32>
    %5 = vector.broadcast %2 : vector<128x1xf32> to vector<128x128xf32>
    %6 = arith.mulf %4, %5 : vector<128x128xf32>
    %7 = arith.truncf %6 : vector<128x128xf32> to vector<128x128xbf16>
    %c0_5 = arith.constant 0 : index
    %c0_6 = arith.constant 0 : index
    %8 = vector.load %arg3[%c0_5, %c0_6] : memref<128x128xbf16, #tpu.memory_space<vmem>>, vector<128x128xbf16>
    %cst_7 = arith.constant dense<0.000000e+00> : vector<128x128xf32>
    %9 = tpu.matmul %7, %8, %cst_7 {dimension_numbers = #tpu.dot_dimension_numbers<[1], [0], [0], [1], [0, 0, 1, 1], [], []>} : vector<128x128xbf16>, vector<128x128xbf16>, vector<128x128xf32> -> vector<128x128xf32>
    %c0_8 = arith.constant 0 : index
    %c0_9 = arith.constant 0 : index
    %10 = vector.load %arg2[%c0_8, %c0_9] : memref<128x128xbf16, #tpu.memory_space<vmem>>, vector<128x128xbf16>
    %c0_10 = arith.constant 0 : index
    %c0_11 = arith.constant 0 : index
    %11 = vector.load %arg4[%c0_10, %c0_11] : memref<128x128xbf16, #tpu.memory_space<vmem>>, vector<128x128xbf16>
    %cst_12 = arith.constant dense<0.000000e+00> : vector<128x128xf32>
    %12 = tpu.matmul %10, %11, %cst_12 {dimension_numbers = #tpu.dot_dimension_numbers<[1], [0], [0], [1], [0, 0, 1, 1], [], []>} : vector<128x128xbf16>, vector<128x128xbf16>, vector<128x128xf32> -> vector<128x128xf32>
    %13 = arith.addf %9, %12 : vector<128x128xf32>
    %c0_13 = arith.constant 0 : index
    %c0_14 = arith.constant 0 : index
    %14 = vector.load %arg5[%c0_13, %c0_14] : memref<1x128xf32, #tpu.memory_space<vmem>>, vector<1x128xf32>
    %15 = vector.broadcast %14 : vector<1x128xf32> to vector<128x128xf32>
    %16 = arith.addf %13, %15 : vector<128x128xf32>
    %cst_15 = arith.constant 0.000000e+00 : f32
    %17 = vector.broadcast %cst_15 : f32 to vector<128x128xf32>
    %18 = arith.maximumf %16, %17 : vector<128x128xf32>
    %19 = arith.truncf %18 : vector<128x128xf32> to vector<128x128xbf16>
    %cst_16 = arith.constant dense<0.000000e+00> : vector<128x128xf32>
    %20 = tpu.matmul %1, %19, %cst_16 {dimension_numbers = #tpu.dot_dimension_numbers<[1], [0], [0], [1], [0, 0, 1, 1], [], []>} : vector<128x128xbf16>, vector<128x128xbf16>, vector<128x128xf32> -> vector<128x128xf32>
    %21 = vector.broadcast %2 : vector<128x1xf32> to vector<128x128xf32>
    %22 = arith.mulf %20, %21 : vector<128x128xf32>
    %23 = arith.truncf %22 : vector<128x128xf32> to vector<128x128xbf16>
    %c0_17 = arith.constant 0 : index
    %c0_18 = arith.constant 0 : index
    %24 = vector.load %arg6[%c0_17, %c0_18] : memref<128x128xbf16, #tpu.memory_space<vmem>>, vector<128x128xbf16>
    %cst_19 = arith.constant dense<0.000000e+00> : vector<128x128xf32>
    %25 = tpu.matmul %23, %24, %cst_19 {dimension_numbers = #tpu.dot_dimension_numbers<[1], [0], [0], [1], [0, 0, 1, 1], [], []>} : vector<128x128xbf16>, vector<128x128xbf16>, vector<128x128xf32> -> vector<128x128xf32>
    %c0_20 = arith.constant 0 : index
    %c0_21 = arith.constant 0 : index
    %26 = vector.load %arg7[%c0_20, %c0_21] : memref<128x128xbf16, #tpu.memory_space<vmem>>, vector<128x128xbf16>
    %cst_22 = arith.constant dense<0.000000e+00> : vector<128x128xf32>
    %27 = tpu.matmul %19, %26, %cst_22 {dimension_numbers = #tpu.dot_dimension_numbers<[1], [0], [0], [1], [0, 0, 1, 1], [], []>} : vector<128x128xbf16>, vector<128x128xbf16>, vector<128x128xf32> -> vector<128x128xf32>
    %28 = arith.addf %25, %27 : vector<128x128xf32>
    %c0_23 = arith.constant 0 : index
    %c0_24 = arith.constant 0 : index
    %29 = vector.load %arg8[%c0_23, %c0_24] : memref<1x128xf32, #tpu.memory_space<vmem>>, vector<1x128xf32>
    %30 = vector.broadcast %29 : vector<1x128xf32> to vector<128x128xf32>
    %31 = arith.addf %28, %30 : vector<128x128xf32>
    %c0_25 = arith.constant 0 : index
    %c0_26 = arith.constant 0 : index
    %32 = vector.load %arg9[%c0_25, %c0_26] : memref<128x128xf32, #tpu.memory_space<vmem>>, vector<128x128xf32>
    tpu.vector_store %arg9[%c0_25, %c0_26], %31 {strides = array<i32>} : memref<128x128xf32, #tpu.memory_space<vmem>>, vector<128x128xf32>,
    return
  }
}

</mosaic_0001>

<llo_original>
// kernel: tpu_custom_call.1
$region0: #{tpu_custom_call.1}
  #allocation0 [shape = 'u32[]', space=smem, size = 0x4, offset = 0x4, fixed_abs, tag = 'smem constant byte address 0x4 - core index']
  #allocation1 [shape = 'u32[144,128]{1,0:T(1,128)}', space=vmem, size = 0x12000, scoped, tag = 'internal scratch']
  %s0 = inlined_call_operand.hbm [shape: s8[128,128], index: 0, kind: input, shape index: {}]
  %s1 = inlined_call_operand.vmem [shape: f32[128,1], index: 1, kind: input, shape index: {}]
  %s2 = inlined_call_operand.vmem [shape: bf16[128,128], index: 2, kind: input, shape index: {}]
  %s3 = inlined_call_operand.vmem [shape: bf16[128,128], index: 3, kind: input, shape index: {}]
  %s4 = inlined_call_operand.hbm [shape: bf16[128,128], index: 4, kind: input, shape index: {}]
  %s5 = inlined_call_operand.vmem [shape: f32[1,128], index: 5, kind: input, shape index: {}]
  %s6 = inlined_call_operand.hbm [shape: bf16[128,128], index: 6, kind: input, shape index: {}]
  %s7 = inlined_call_operand.hbm [shape: bf16[128,128], index: 7, kind: input, shape index: {}]
  %s8 = inlined_call_operand.vmem [shape: f32[1,128], index: 8, kind: input, shape index: {}]
  %s9 = inlined_call_operand.hbm [shape: f32[128,128], index: 9, kind: output, shape index: {}]
  %s10 = sld [smem:[#allocation0]]
  $region62: #{tpu_custom_call.1} parent=0
    _
  %s12 = ssub.s32 1, %s10
  %s13 = scalar_select 0, %s12, %s10
  $region1: #{tpu_custom_call.1} parent=0
    #allocation2 [shape = 'u8[16384]{0}', space=vmem, size = 0x4000, scoped, tag = 'input window, operand 0, single buffered']
    #allocation3 [shape = 's32[1]{0}', space=sflag, size = 0x4, scoped, tag = 'scoped memory for tpu_custom_call.1']
    #allocation4 [shape = 's32[1]{0}', space=sflag, size = 0x4, scoped, tag = 'scoped memory for tpu_custom_call.1']
    #allocation5 [shape = 'u8[32768]{0}', space=vmem, size = 0x8000, scoped, tag = 'input window, operand 4, single buffered']
    #allocation6 [shape = 's32[1]{0}', space=sflag, size = 0x4, scoped, tag = 'scoped memory for tpu_custom_call.1']
    #allocation7 [shape = 'u8[32768]{0}', space=vmem, size = 0x8000, scoped, tag = 'input window, operand 6, single buffered']
    #allocation8 [shape = 'u8[32768]{0}', space=vmem, size = 0x8000, scoped, tag = 'input window, operand 7, single buffered']
    #allocation9 [shape = 's32[1]{0}', space=sflag, size = 0x4, scoped, tag = 'scoped memory for tpu_custom_call.1']
    #allocation10 [shape = 'u8[65536]{0}', space=vmem, size = 0x10000, scoped, tag = 'output window, operand 0, single buffered']
    %14 = vsyncpa [#allocation3], 0
    %15 = vsyncpa [#allocation6], 0
    %16 = vsyncpa [#allocation9], 0
    %17 = vsyncpa [#allocation4], 0
    // Predicated region
    $region2: #{tpu_custom_call.1} parent=1 // pred_check
      _
    $region3: #{tpu_custom_call.1} parent=1 // pred_check_branch
      %19 = sbr.rel (0) target = $region5
    $region4: #{tpu_custom_call.1} parent=1 // pred_region
      %s21 = ssub.s32 512, 512
      %22 = vsyncadd [#allocation3], %s21
      %s23 = sshll.u32 [#allocation2], 4
      %s24 = int_to_ptr.vmem [resolvable:$true] %s23
      %29 = dma.hbm_to_vmem [thread:$0]  %s0, 512, %s24, [#allocation3], 128, 128, 8
    $region5: #{tpu_custom_call.1} parent=1 // pred_fallthru
      _
    // Predicated region
    $region6: #{tpu_custom_call.1} parent=1 // pred_check
      _
    $region7: #{tpu_custom_call.1} parent=1 // pred_check_branch
      %31 = sbr.rel (0) target = $region9
    $region8: #{tpu_custom_call.1} parent=1 // pred_region
      _
    $region9: #{tpu_custom_call.1} parent=1 // pred_fallthru
      _
    // Predicated region
    $region10: #{tpu_custom_call.1} parent=1 // pred_check
      _
    $region11: #{tpu_custom_call.1} parent=1 // pred_check_branch
      %33 = sbr.rel (0) target = $region13
    $region12: #{tpu_custom_call.1} parent=1 // pred_region
      _
    $region13: #{tpu_custom_call.1} parent=1 // pred_fallthru
      _
    // Predicated region
    $region14: #{tpu_custom_call.1} parent=1 // pred_check
      _
    $region15: #{tpu_custom_call.1} parent=1 // pred_check_branch
      %35 = sbr.rel (0) target = $region17
    $region16: #{tpu_custom_call.1} parent=1 // pred_region
      _
    $region17: #{tpu_custom_call.1} parent=1 // pred_fallthru
      _
    // Predicated region
    $region18: #{tpu_custom_call.1} parent=1 // pred_check
      _
    $region19: #{tpu_custom_call.1} parent=1 // pred_check_branch
      %37 = sbr.rel (0) target = $region21
    $region20: #{tpu_custom_call.1} parent=1 // pred_region
      %s39 = ssub.s32 1024, 1024
      %40 = vsyncadd [#allocation6], %s39
      %s41 = sshll.u32 [#allocation5], 4
      %s42 = int_to_ptr.vmem [resolvable:$true] %s41
      %47 = dma.hbm_to_vmem [thread:$0]  %s4, 1024, %s42, [#allocation6], 64, 64, 4
    $region21: #{tpu_custom_call.1} parent=1 // pred_fallthru
      _
    // Predicated region
    $region22: #{tpu_custom_call.1} parent=1 // pred_check
      _
    $region23: #{tpu_custom_call.1} parent=1 // pred_check_branch
      %49 = sbr.rel (0) target = $region25
    $region24: #{tpu_custom_call.1} parent=1 // pred_region
      _
    $region25: #{tpu_custom_call.1} parent=1 // pred_fallthru
      _
    // Predicated region
    $region26: #{tpu_custom_call.1} parent=1 // pred_check
      _
    $region27: #{tpu_custom_call.1} parent=1 // pred_check_branch
      %51 = sbr.rel (0) target = $region29
    $region28: #{tpu_custom_call.1} parent=1 // pred_region
      %s53 = ssub.s32 1024, 1024
      %54 = vsyncadd [#allocation6], %s53
      %s55 = sshll.u32 [#allocation7], 4
      %s56 = int_to_ptr.vmem [resolvable:$true] %s55
      %61 = dma.hbm_to_vmem [thread:$0]  %s6, 1024, %s56, [#allocation6], 64, 64, 4
    $region29: #{tpu_custom_call.1} parent=1 // pred_fallthru
      _
    // Predicated region
    $region30: #{tpu_custom_call.1} parent=1 // pred_check
      _
    $region31: #{tpu_custom_call.1} parent=1 // pred_check_branch
      %63 = sbr.rel (0) target = $region33
    $region32: #{tpu_custom_call.1} parent=1 // pred_region
      %s65 = ssub.s32 1024, 1024
      %66 = vsyncadd [#allocation9], %s65
      %s67 = sshll.u32 [#allocation8], 4
      %s68 = int_to_ptr.vmem [resolvable:$true] %s67
      %73 = dma.hbm_to_vmem [thread:$0]  %s7, 1024, %s68, [#allocation9], 64, 64, 4
    $region33: #{tpu_custom_call.1} parent=1 // pred_fallthru
      _
    // Predicated region
    $region34: #{tpu_custom_call.1} parent=1 // pred_check
      _
    $region35: #{tpu_custom_call.1} parent=1 // pred_check_branch
      %75 = sbr.rel (0) target = $region37
    $region36: #{tpu_custom_call.1} parent=1 // pred_region
      _
    $region37: #{tpu_custom_call.1} parent=1 // pred_fallthru
      _
    // Predicated region
    $region38: #{tpu_custom_call.1} parent=1 // pred_check
      _
    $region39: #{tpu_custom_call.1} parent=1 // pred_check_branch
      %77 = sbr.rel (0) target = $region41
    $region40: #{tpu_custom_call.1} parent=1 // pred_region
      %78 = dma.done [#allocation3], 512
    $region41: #{tpu_custom_call.1} parent=1 // pred_fallthru
      _
    // Predicated region
    $region42: #{tpu_custom_call.1} parent=1 // pred_check
      _
    $region43: #{tpu_custom_call.1} parent=1 // pred_check_branch
      %80 = sbr.rel (0) target = $region45
    $region44: #{tpu_custom_call.1} parent=1 // pred_region
      %81 = dma.done [#allocation6], 1024
    $region45: #{tpu_custom_call.1} parent=1 // pred_fallthru
      _
    // Predicated region
    $region46: #{tpu_custom_call.1} parent=1 // pred_check
      _
    $region47: #{tpu_custom_call.1} parent=1 // pred_check_branch
      %83 = sbr.rel (0) target = $region49
    $region48: #{tpu_custom_call.1} parent=1 // pred_region
      %84 = dma.done [#allocation6], 1024
    $region49: #{tpu_custom_call.1} parent=1 // pred_fallthru
      _
    // Predicated region
    $region50: #{tpu_custom_call.1} parent=1 // pred_check
      _
    $region51: #{tpu_custom_call.1} parent=1 // pred_check_branch
      %86 = sbr.rel (0) target = $region53
    $region52: #{tpu_custom_call.1} parent=1 // pred_region
      %87 = dma.done [#allocation9], 1024
    $region53: #{tpu_custom_call.1} parent=1 // pred_fallthru
      _
    %v89 = vld [vmem:[#allocation2] sm:$0xff]
    %v90 = vld [vmem:[#allocation2 + $0x8] sm:$0xff]
    %v91 = vld [vmem:[#allocation2 + $0x10] sm:$0xff]
    %v92 = vld [vmem:[#allocation2 + $0x18] sm:$0xff]
    %v93 = vunpack.c.l.s8.bf16 %v89
    %v94 = vunpack.c.h.s8.bf16 %v89
    %v95 = vunpack.c.l.s8.bf16 %v90
    %v96 = vunpack.c.h.s8.bf16 %v90
    %v97 = vunpack.c.l.s8.bf16 %v91
    %v98 = vunpack.c.h.s8.bf16 %v91
    %v99 = vunpack.c.l.s8.bf16 %v92
    %v100 = vunpack.c.h.s8.bf16 %v92
    %v101 = vld [vmem:[%s1] sm:$0xff]
    %v102 = vld [vmem:[%s1 + $0x8] sm:$0xff]
    %v103 = vld [vmem:[%s1 + $0x10] sm:$0xff]
    %v104 = vld [vmem:[%s1 + $0x18] sm:$0xff]
    %v105 = vld [vmem:[%s1 + $0x20] sm:$0xff]
    %v106 = vld [vmem:[%s1 + $0x28] sm:$0xff]
    %v107 = vld [vmem:[%s1 + $0x30] sm:$0xff]
    %v108 = vld [vmem:[%s1 + $0x38] sm:$0xff]
    %v109 = vld [vmem:[%s1 + $0x40] sm:$0xff]
    %v110 = vld [vmem:[%s1 + $0x48] sm:$0xff]
    %v111 = vld [vmem:[%s1 + $0x50] sm:$0xff]
    %v112 = vld [vmem:[%s1 + $0x58] sm:$0xff]
    %v113 = vld [vmem:[%s1 + $0x60] sm:$0xff]
    %v114 = vld [vmem:[%s1 + $0x68] sm:$0xff]
    %v115 = vld [vmem:[%s1 + $0x70] sm:$0xff]
    %v116 = vld [vmem:[%s1 + $0x78] sm:$0xff]
    %v117 = vld [vmem:[%s2] sm:$0xf]
    %v118 = vld [vmem:[%s2 + $0x4] sm:$0xf]
    %v119 = vld [vmem:[%s2 + $0x8] sm:$0xf]
    %v120 = vld [vmem:[%s2 + $0xc] sm:$0xf]
    %v121 = vld [vmem:[%s2 + $0x10] sm:$0xf]
    %v122 = vld [vmem:[%s2 + $0x14] sm:$0xf]
    %v123 = vld [vmem:[%s2 + $0x18] sm:$0xf]
    %v124 = vld [vmem:[%s2 + $0x1c] sm:$0xf]
    %v125 = vld [vmem:[%s2 + $0x20] sm:$0xf]
    %v126 = vld [vmem:[%s2 + $0x24] sm:$0xf]
    %v127 = vld [vmem:[%s2 + $0x28] sm:$0xf]
    %v128 = vld [vmem:[%s2 + $0x2c] sm:$0xf]
    %v129 = vld [vmem:[%s2 + $0x30] sm:$0xf]
    %v130 = vld [vmem:[%s2 + $0x34] sm:$0xf]
    %v131 = vld [vmem:[%s2 + $0x38] sm:$0xf]
    %v132 = vld [vmem:[%s2 + $0x3c] sm:$0xf]
    %v149 = vunpack.c.l.b16 %v117
    %v150 = vunpack.c.l.b16 %v118
    %v151 = vunpack.c.l.b16 %v119
    %v152 = vunpack.c.l.b16 %v120
    %v153 = vunpack.c.l.b16 %v121
    %v154 = vunpack.c.l.b16 %v122
    %v155 = vunpack.c.l.b16 %v123
    %v156 = vunpack.c.l.b16 %v124
    %v157 = vunpack.c.l.b16 %v125
    %v158 = vunpack.c.l.b16 %v126
    %v159 = vunpack.c.l.b16 %v127
    %v160 = vunpack.c.l.b16 %v128
    %v161 = vunpack.c.l.b16 %v129
    %v162 = vunpack.c.l.b16 %v130
    %v163 = vunpack.c.l.b16 %v131
    %v164 = vunpack.c.l.b16 %v132
    %v165 = vpack.c.b16 %v150, %v149
    %v166 = vpack.c.b16 %v152, %v151
    %v167 = vpack.c.b16 %v154, %v153
    %v168 = vpack.c.b16 %v156, %v155
    %v169 = vpack.c.b16 %v158, %v157
    %v170 = vpack.c.b16 %v160, %v159
    %v171 = vpack.c.b16 %v162, %v161
    %v172 = vpack.c.b16 %v164, %v163
    %181 = vmatprep.subr.bf16.mxu0 0
    %182 = vmatpush1.bf16.msra.mxu0 %v165
    %183 = vmatprep.subr.bf16.mxu0 0
    %184 = vmatpush1.bf16.msra.mxu0 %v166
    %185 = vmatprep.subr.bf16.mxu0 0
    %186 = vmatpush1.bf16.msra.mxu0 %v167
    %187 = vmatprep.subr.bf16.mxu0 0
    %188 = vmatpush1.bf16.msra.mxu0 %v168
    %189 = vmatprep.subr.bf16.mxu0 0
    %190 = vmatpush1.bf16.msra.mxu0 %v169
    %191 = vmatprep.subr.bf16.mxu0 0
    %192 = vmatpush1.bf16.msra.mxu0 %v170
    %193 = vmatprep.subr.bf16.mxu0 0
    %194 = vmatpush1.bf16.msra.mxu0 %v171
    %195 = vmatprep.subr.bf16.mxu0 0
    %196 = vmatpush1.bf16.msra.mxu0 %v172
    %197 = vmatprep.subr.bf16.mxu0 0
    %198 = vmatpush1.bf16.msra.mxu0 0
    %199 = vmatprep.subr.bf16.mxu0 0
    %200 = vmatpush1.bf16.msra.mxu0 0
    %201 = vmatprep.subr.bf16.mxu0 0
    %202 = vmatpush1.bf16.msra.mxu0 0
    %203 = vmatprep.subr.bf16.mxu0 0
    %204 = vmatpush1.bf16.msra.mxu0 0
    %205 = vmatprep.subr.bf16.mxu0 0
    %206 = vmatpush1.bf16.msra.mxu0 0
    %207 = vmatprep.subr.bf16.mxu0 0
    %208 = vmatpush1.bf16.msra.mxu0 0
    %209 = vmatprep.subr.bf16.mxu0 0
    %210 = vmatpush1.bf16.msra.mxu0 0
    %211 = vmatprep.subr.bf16.mxu0 0
    %212 = vmatpush1.bf16.msra.mxu0 0
    %213 = vmatprep.mubr.bf16.mxu0 0
    %214 = vmatmul.mubr.bf16.gmra.mrb[0].mxu0 %v93
    %v215 = vpop.f32.mrb[0].mxu0
    %v216 = vadd.f32 0.0, %v215
    %v217 = vpop.f32.mrb[0].mxu0
    %v218 = vpop.f32.mrb[0].mxu0
    %v219 = vadd.f32 0.0, %v218
    %v220 = vpop.f32.mrb[0].mxu0
    %221 = vmatprep.mubr.bf16.mxu0 0
    %222 = vmatmul.mubr.bf16.gmra.mrb[0].mxu0 %v94
    %v223 = vpop.f32.mrb[0].mxu0
    %v224 = vadd.f32 0.0, %v223
    %v225 = vpop.f32.mrb[0].mxu0
    %v226 = vpop.f32.mrb[0].mxu0
    %v227 = vadd.f32 0.0, %v226
    %v228 = vpop.f32.mrb[0].mxu0
    %229 = vmatprep.mubr.bf16.mxu0 0
    %230 = vmatmul.mubr.bf16.gmra.mrb[0].mxu0 %v95
    %v231 = vpop.f32.mrb[0].mxu0
    %v232 = vadd.f32 0.0, %v231
    %v233 = vpop.f32.mrb[0].mxu0
    %v234 = vpop.f32.mrb[0].mxu0
    %v235 = vadd.f32 0.0, %v234
    %v236 = vpop.f32.mrb[0].mxu0
    %237 = vmatprep.mubr.bf16.mxu0 0
    %238 = vmatmul.mubr.bf16.gmra.mrb[0].mxu0 %v96
    %v239 = vpop.f32.mrb[0].mxu0
    %v240 = vadd.f32 0.0, %v239
    %v241 = vpop.f32.mrb[0].mxu0
    %v242 = vpop.f32.mrb[0].mxu0
    %v243 = vadd.f32 0.0, %v242
    %v244 = vpop.f32.mrb[0].mxu0
    %245 = vmatprep.mubr.bf16.mxu0 0
    %246 = vmatmul.mubr.bf16.gmra.mrb[0].mxu0 %v97
    %v247 = vpop.f32.mrb[0].mxu0
    %v248 = vadd.f32 0.0, %v247
    %v249 = vpop.f32.mrb[0].mxu0
    %v250 = vpop.f32.mrb[0].mxu0
    %v251 = vadd.f32 0.0, %v250
    %v252 = vpop.f32.mrb[0].mxu0
    %253 = vmatprep.mubr.bf16.mxu0 0
    %254 = vmatmul.mubr.bf16.gmra.mrb[0].mxu0 %v98
    %v255 = vpop.f32.mrb[0].mxu0
    %v256 = vadd.f32 0.0, %v255
    %v257 = vpop.f32.mrb[0].mxu0
    %v258 = vpop.f32.mrb[0].mxu0
    %v259 = vadd.f32 0.0, %v258
    %v260 = vpop.f32.mrb[0].mxu0
    %261 = vmatprep.mubr.bf16.mxu0 0
    %262 = vmatmul.mubr.bf16.gmra.mrb[0].mxu0 %v99
    %v263 = vpop.f32.mrb[0].mxu0
    %v264 = vadd.f32 0.0, %v263
    %v265 = vpop.f32.mrb[0].mxu0
    %v266 = vpop.f32.mrb[0].mxu0
    %v267 = vadd.f32 0.0, %v266
    %v268 = vpop.f32.mrb[0].mxu0
    %269 = vmatprep.mubr.bf16.mxu0 0
    %270 = vmatmul.mubr.bf16.gmra.mrb[0].mxu0 %v100
    %v271 = vpop.f32.mrb[0].mxu0
    %v272 = vadd.f32 0.0, %v271
    %v273 = vpop.f32.mrb[0].mxu0
    %v274 = vpop.f32.mrb[0].mxu0
    %v275 = vadd.f32 0.0, %v274
    %v276 = vpop.f32.mrb[0].mxu0
    %277 = vdwg.mxu0
    %279 = vset.pattern.permute.xlu0 0
    %280 = vperm.xlu0 %279, %v101
    %v281 = vpop.permute.xlu0 %280
    %284 = vset.pattern.permute.xlu0 0
    %285 = vperm.xlu0 %284, %v102
    %v286 = vpop.permute.xlu0 %285
    %289 = vset.pattern.permute.xlu0 0
    %290 = vperm.xlu0 %289, %v103
    %v291 = vpop.permute.xlu0 %290
    %294 = vset.pattern.permute.xlu0 0
    %295 = vperm.xlu0 %294, %v104
    %v296 = vpop.permute.xlu0 %295
    %299 = vset.pattern.permute.xlu0 0
    %300 = vperm.xlu0 %299, %v105
    %v301 = vpop.permute.xlu0 %300
    %304 = vset.pattern.permute.xlu0 0
    %305 = vperm.xlu0 %304, %v106
    %v306 = vpop.permute.xlu0 %305
    %309 = vset.pattern.permute.xlu0 0
    %310 = vperm.xlu0 %309, %v107
    %v311 = vpop.permute.xlu0 %310
    %314 = vset.pattern.permute.xlu0 0
    %315 = vperm.xlu0 %314, %v108
    %v316 = vpop.permute.xlu0 %315
    %319 = vset.pattern.permute.xlu0 0
    %320 = vperm.xlu0 %319, %v109
    %v321 = vpop.permute.xlu0 %320
    %324 = vset.pattern.permute.xlu0 0
    %325 = vperm.xlu0 %324, %v110
    %v326 = vpop.permute.xlu0 %325
    %329 = vset.pattern.permute.xlu0 0
    %330 = vperm.xlu0 %329, %v111
    %v331 = vpop.permute.xlu0 %330
    %334 = vset.pattern.permute.xlu0 0
    %335 = vperm.xlu0 %334, %v112
    %v336 = vpop.permute.xlu0 %335
    %339 = vset.pattern.permute.xlu0 0
    %340 = vperm.xlu0 %339, %v113
    %v341 = vpop.permute.xlu0 %340
    %344 = vset.pattern.permute.xlu0 0
    %345 = vperm.xlu0 %344, %v114
    %v346 = vpop.permute.xlu0 %345
    %349 = vset.pattern.permute.xlu0 0
    %350 = vperm.xlu0 %349, %v115
    %v351 = vpop.permute.xlu0 %350
    %354 = vset.pattern.permute.xlu0 0
    %355 = vperm.xlu0 %354, %v116
    %v356 = vpop.permute.xlu0 %355
    %v358 = vmul.f32 %v216, %v281
    %v359 = vmul.f32 %v219, %v286
    %v360 = vmul.f32 %v224, %v291
    %v361 = vmul.f32 %v227, %v296
    %v362 = vmul.f32 %v232, %v301
    %v363 = vmul.f32 %v235, %v306
    %v364 = vmul.f32 %v240, %v311
    %v365 = vmul.f32 %v243, %v316
    %v366 = vmul.f32 %v248, %v321
    %v367 = vmul.f32 %v251, %v326
    %v368 = vmul.f32 %v256, %v331
    %v369 = vmul.f32 %v259, %v336
    %v370 = vmul.f32 %v264, %v341
    %v371 = vmul.f32 %v267, %v346
    %v372 = vmul.f32 %v272, %v351
    %v373 = vmul.f32 %v275, %v356
    %v374 = vpack.c.bf16 %v359, %v358
    %v375 = vpack.c.bf16 %v361, %v360
    %v376 = vpack.c.bf16 %v363, %v362
    %v377 = vpack.c.bf16 %v365, %v364
    %v378 = vpack.c.bf16 %v367, %v366
    %v379 = vpack.c.bf16 %v369, %v368
    %v380 = vpack.c.bf16 %v371, %v370
    %v381 = vpack.c.bf16 %v373, %v372
    %v382 = vld [vmem:[%s3] sm:$0xf]
    %v383 = vld [vmem:[%s3 + $0x4] sm:$0xf]
    %v384 = vld [vmem:[%s3 + $0x8] sm:$0xf]
    %v385 = vld [vmem:[%s3 + $0xc] sm:$0xf]
    %v386 = vld [vmem:[%s3 + $0x10] sm:$0xf]
    %v387 = vld [vmem:[%s3 + $0x14] sm:$0xf]
    %v388 = vld [vmem:[%s3 + $0x18] sm:$0xf]
    %v389 = vld [vmem:[%s3 + $0x1c] sm:$0xf]
    %v390 = vld [vmem:[%s3 + $0x20] sm:$0xf]
    %v391 = vld [vmem:[%s3 + $0x24] sm:$0xf]
    %v392 = vld [vmem:[%s3 + $0x28] sm:$0xf]
    %v393 = vld [vmem:[%s3 + $0x2c] sm:$0xf]
    %v394 = vld [vmem:[%s3 + $0x30] sm:$0xf]
    %v395 = vld [vmem:[%s3 + $0x34] sm:$0xf]
    %v396 = vld [vmem:[%s3 + $0x38] sm:$0xf]
    %v397 = vld [vmem:[%s3 + $0x3c] sm:$0xf]
    %v398 = vld [vmem:[#allocation5] sm:$0xf]
    %v399 = vld [vmem:[#allocation5 + $0x4] sm:$0xf]
    %v400 = vld [vmem:[#allocation5 + $0x8] sm:$0xf]
    %v401 = vld [vmem:[#allocation5 + $0xc] sm:$0xf]
    %v402 = vld [vmem:[#allocation5 + $0x10] sm:$0xf]
    %v403 = vld [vmem:[#allocation5 + $0x14] sm:$0xf]
    %v404 = vld [vmem:[#allocation5 + $0x18] sm:$0xf]
    %v405 = vld [vmem:[#allocation5 + $0x1c] sm:$0xf]
    %v406 = vld [vmem:[#allocation5 + $0x20] sm:$0xf]
    %v407 = vld [vmem:[#allocation5 + $0x24] sm:$0xf]
    %v408 = vld [vmem:[#allocation5 + $0x28] sm:$0xf]
    %v409 = vld [vmem:[#allocation5 + $0x2c] sm:$0xf]
    %v410 = vld [vmem:[#allocation5 + $0x30] sm:$0xf]
    %v411 = vld [vmem:[#allocation5 + $0x34] sm:$0xf]
    %v412 = vld [vmem:[#allocation5 + $0x38] sm:$0xf]
    %v413 = vld [vmem:[#allocation5 + $0x3c] sm:$0xf]
    %v430 = vunpack.c.l.b16 %v398
    %v431 = vunpack.c.l.b16 %v399
    %v432 = vunpack.c.l.b16 %v400
    %v433 = vunpack.c.l.b16 %v401
    %v434 = vunpack.c.l.b16 %v402
    %v435 = vunpack.c.l.b16 %v403
    %v436 = vunpack.c.l.b16 %v404
    %v437 = vunpack.c.l.b16 %v405
    %v438 = vunpack.c.l.b16 %v406
    %v439 = vunpack.c.l.b16 %v407
    %v440 = vunpack.c.l.b16 %v408
    %v441 = vunpack.c.l.b16 %v409
    %v442 = vunpack.c.l.b16 %v410
    %v443 = vunpack.c.l.b16 %v411
    %v444 = vunpack.c.l.b16 %v412
    %v445 = vunpack.c.l.b16 %v413
    %v446 = vpack.c.b16 %v431, %v430
    %v447 = vpack.c.b16 %v433, %v432
    %v448 = vpack.c.b16 %v435, %v434
    %v449 = vpack.c.b16 %v437, %v436
    %v450 = vpack.c.b16 %v439, %v438
    %v451 = vpack.c.b16 %v441, %v440
    %v452 = vpack.c.b16 %v443, %v442
    %v453 = vpack.c.b16 %v445, %v444
    %462 = vmatprep.subr.bf16.mxu0 0
    %463 = vmatpush1.bf16.msra.mxu0 %v446
    %464 = vmatprep.subr.bf16.mxu0 0
    %465 = vmatpush1.bf16.msra.mxu0 %v447
    %466 = vmatprep.subr.bf16.mxu0 0
    %467 = vmatpush1.bf16.msra.mxu0 %v448
    %468 = vmatprep.subr.bf16.mxu0 0
    %469 = vmatpush1.bf16.msra.mxu0 %v449
    %470 = vmatprep.subr.bf16.mxu0 0
    %471 = vmatpush1.bf16.msra.mxu0 %v450
    %472 = vmatprep.subr.bf16.mxu0 0
    %473 = vmatpush1.bf16.msra.mxu0 %v451
    %474 = vmatprep.subr.bf16.mxu0 0
    %475 = vmatpush1.bf16.msra.mxu0 %v452
    %476 = vmatprep.subr.bf16.mxu0 0
    %477 = vmatpush1.bf16.msra.mxu0 %v453
    %478 = vmatprep.subr.bf16.mxu0 0
    %479 = vmatpush1.bf16.msra.mxu0 0
    %480 = vmatprep.subr.bf16.mxu0 0
    %481 = vmatpush1.bf16.msra.mxu0 0
    %482 = vmatprep.subr.bf16.mxu0 0
    %483 = vmatpush1.bf16.msra.mxu0 0
    %484 = vmatprep.subr.bf16.mxu0 0
    %485 = vmatpush1.bf16.msra.mxu0 0
    %486 = vmatprep.subr.bf16.mxu0 0
    %487 = vmatpush1.bf16.msra.mxu0 0
    %488 = vmatprep.subr.bf16.mxu0 0
    %489 = vmatpush1.bf16.msra.mxu0 0
    %490 = vmatprep.subr.bf16.mxu0 0
    %491 = vmatpush1.bf16.msra.mxu0 0
    %492 = vmatprep.subr.bf16.mxu0 0
    %493 = vmatpush1.bf16.msra.mxu0 0
    %494 = vmatprep.mubr.bf16.mxu0 0
    %495 = vmatmul.mubr.bf16.gmra.mrb[0].mxu0 %v165
    %v496 = vpop.f32.mrb[0].mxu0
    %v497 = vadd.f32 0.0, %v496
    %v498 = vpop.f32.mrb[0].mxu0
    %v499 = vpop.f32.mrb[0].mxu0
    %v500 = vadd.f32 0.0, %v499
    %v501 = vpop.f32.mrb[0].mxu0
    %502 = vmatprep.mubr.bf16.mxu0 0
    %503 = vmatmul.mubr.bf16.gmra.mrb[0].mxu0 %v166
    %v504 = vpop.f32.mrb[0].mxu0
    %v505 = vadd.f32 0.0, %v504
    %v506 = vpop.f32.mrb[0].mxu0
    %v507 = vpop.f32.mrb[0].mxu0
    %v508 = vadd.f32 0.0, %v507
    %v509 = vpop.f32.mrb[0].mxu0
    %510 = vmatprep.mubr.bf16.mxu0 0
    %511 = vmatmul.mubr.bf16.gmra.mrb[0].mxu0 %v167
    %v512 = vpop.f32.mrb[0].mxu0
    %v513 = vadd.f32 0.0, %v512
    %v514 = vpop.f32.mrb[0].mxu0
    %v515 = vpop.f32.mrb[0].mxu0
    %v516 = vadd.f32 0.0, %v515
    %v517 = vpop.f32.mrb[0].mxu0
    %518 = vmatprep.mubr.bf16.mxu0 0
    %519 = vmatmul.mubr.bf16.gmra.mrb[0].mxu0 %v168
    %v520 = vpop.f32.mrb[0].mxu0
    %v521 = vadd.f32 0.0, %v520
    %v522 = vpop.f32.mrb[0].mxu0
    %v523 = vpop.f32.mrb[0].mxu0
    %v524 = vadd.f32 0.0, %v523
    %v525 = vpop.f32.mrb[0].mxu0
    %526 = vmatprep.mubr.bf16.mxu0 0
    %527 = vmatmul.mubr.bf16.gmra.mrb[0].mxu0 %v169
    %v528 = vpop.f32.mrb[0].mxu0
    %v529 = vadd.f32 0.0, %v528
    %v530 = vpop.f32.mrb[0].mxu0
    %v531 = vpop.f32.mrb[0].mxu0
    %v532 = vadd.f32 0.0, %v531
    %v533 = vpop.f32.mrb[0].mxu0
    %534 = vmatprep.mubr.bf16.mxu0 0
    %535 = vmatmul.mubr.bf16.gmra.mrb[0].mxu0 %v170
    %v536 = vpop.f32.mrb[0].mxu0
    %v537 = vadd.f32 0.0, %v536
    %v538 = vpop.f32.mrb[0].mxu0
    %v539 = vpop.f32.mrb[0].mxu0
    %v540 = vadd.f32 0.0, %v539
    %v541 = vpop.f32.mrb[0].mxu0
    %542 = vmatprep.mubr.bf16.mxu0 0
    %543 = vmatmul.mubr.bf16.gmra.mrb[0].mxu0 %v171
    %v544 = vpop.f32.mrb[0].mxu0
    %v545 = vadd.f32 0.0, %v544
    %v546 = vpop.f32.mrb[0].mxu0
    %v547 = vpop.f32.mrb[0].mxu0
    %v548 = vadd.f32 0.0, %v547
    %v549 = vpop.f32.mrb[0].mxu0
    %550 = vmatprep.mubr.bf16.mxu0 0
    %551 = vmatmul.mubr.bf16.gmra.mrb[0].mxu0 %v172
    %v552 = vpop.f32.mrb[0].mxu0
    %v553 = vadd.f32 0.0, %v552
    %v554 = vpop.f32.mrb[0].mxu0
    %v555 = vpop.f32.mrb[0].mxu0
    %v556 = vadd.f32 0.0, %v555
    %v557 = vpop.f32.mrb[0].mxu0
    %558 = vdwg.mxu0
    %v575 = vunpack.c.l.b16 %v382
    %v576 = vunpack.c.l.b16 %v383
    %v577 = vunpack.c.l.b16 %v384
    %v578 = vunpack.c.l.b16 %v385
    %v579 = vunpack.c.l.b16 %v386
    %v580 = vunpack.c.l.b16 %v387
    %v581 = vunpack.c.l.b16 %v388
    %v582 = vunpack.c.l.b16 %v389
    %v583 = vunpack.c.l.b16 %v390
    %v584 = vunpack.c.l.b16 %v391
    %v585 = vunpack.c.l.b16 %v392
    %v586 = vunpack.c.l.b16 %v393
    %v587 = vunpack.c.l.b16 %v394
    %v588 = vunpack.c.l.b16 %v395
    %v589 = vunpack.c.l.b16 %v396
    %v590 = vunpack.c.l.b16 %v397
    %v591 = vpack.c.b16 %v576, %v575
    %v592 = vpack.c.b16 %v578, %v577
    %v593 = vpack.c.b16 %v580, %v579
    %v594 = vpack.c.b16 %v582, %v581
    %v595 = vpack.c.b16 %v584, %v583
    %v596 = vpack.c.b16 %v586, %v585
    %v597 = vpack.c.b16 %v588, %v587
    %v598 = vpack.c.b16 %v590, %v589
    %607 = vmatprep.subr.bf16.mxu0 0
    %608 = vmatpush1.bf16.msra.mxu0 %v591
    %609 = vmatprep.subr.bf16.mxu0 0
    %610 = vmatpush1.bf16.msra.mxu0 %v592
    %611 = vmatprep.subr.bf16.mxu0 0
    %612 = vmatpush1.bf16.msra.mxu0 %v593
    %613 = vmatprep.subr.bf16.mxu0 0
    %614 = vmatpush1.bf16.msra.mxu0 %v594
    %615 = vmatprep.subr.bf16.mxu0 0
    %616 = vmatpush1.bf16.msra.mxu0 %v595
    %617 = vmatprep.subr.bf16.mxu0 0
    %618 = vmatpush1.bf16.msra.mxu0 %v596
    %619 = vmatprep.subr.bf16.mxu0 0
    %620 = vmatpush1.bf16.msra.mxu0 %v597
    %621 = vmatprep.subr.bf16.mxu0 0
    %622 = vmatpush1.bf16.msra.mxu0 %v598
    %623 = vmatprep.subr.bf16.mxu0 0
    %624 = vmatpush1.bf16.msra.mxu0 0
    %625 = vmatprep.subr.bf16.mxu0 0
    %626 = vmatpush1.bf16.msra.mxu0 0
    %627 = vmatprep.subr.bf16.mxu0 0
    %628 = vmatpush1.bf16.msra.mxu0 0
    %629 = vmatprep.subr.bf16.mxu0 0
    %630 = vmatpush1.bf16.msra.mxu0 0
    %631 = vmatprep.subr.bf16.mxu0 0
    %632 = vmatpush1.bf16.msra.mxu0 0
    %633 = vmatprep.subr.bf16.mxu0 0
    %634 = vmatpush1.bf16.msra.mxu0 0
    %635 = vmatprep.subr.bf16.mxu0 0
    %636 = vmatpush1.bf16.msra.mxu0 0
    %637 = vmatprep.subr.bf16.mxu0 0
    %638 = vmatpush1.bf16.msra.mxu0 0
    %639 = vmatprep.mubr.bf16.mxu0 0
    %640 = vmatmul.mubr.bf16.gmra.mrb[0].mxu0 %v374
    %v641 = vpop.f32.mrb[0].mxu0
    %v642 = vadd.f32 %v497, %v641
    %v643 = vpop.f32.mrb[0].mxu0
    %v644 = vpop.f32.mrb[0].mxu0
    %v645 = vadd.f32 %v500, %v644
    %v646 = vpop.f32.mrb[0].mxu0
    %647 = vmatprep.mubr.bf16.mxu0 0
    %648 = vmatmul.mubr.bf16.gmra.mrb[0].mxu0 %v375
    %v649 = vpop.f32.mrb[0].mxu0
    %v650 = vadd.f32 %v505, %v649
    %v651 = vpop.f32.mrb[0].mxu0
    %v652 = vpop.f32.mrb[0].mxu0
    %v653 = vadd.f32 %v508, %v652
    %v654 = vpop.f32.mrb[0].mxu0
    %655 = vmatprep.mubr.bf16.mxu0 0
    %656 = vmatmul.mubr.bf16.gmra.mrb[0].mxu0 %v376
    %v657 = vpop.f32.mrb[0].mxu0
    %v658 = vadd.f32 %v513, %v657
    %v659 = vpop.f32.mrb[0].mxu0
    %v660 = vpop.f32.mrb[0].mxu0
    %v661 = vadd.f32 %v516, %v660
    %v662 = vpop.f32.mrb[0].mxu0
    %663 = vmatprep.mubr.bf16.mxu0 0
    %664 = vmatmul.mubr.bf16.gmra.mrb[0].mxu0 %v377
    %v665 = vpop.f32.mrb[0].mxu0
    %v666 = vadd.f32 %v521, %v665
    %v667 = vpop.f32.mrb[0].mxu0
    %v668 = vpop.f32.mrb[0].mxu0
    %v669 = vadd.f32 %v524, %v668
    %v670 = vpop.f32.mrb[0].mxu0
    %671 = vmatprep.mubr.bf16.mxu0 0
    %672 = vmatmul.mubr.bf16.gmra.mrb[0].mxu0 %v378
    %v673 = vpop.f32.mrb[0].mxu0
    %v674 = vadd.f32 %v529, %v673
    %v675 = vpop.f32.mrb[0].mxu0
    %v676 = vpop.f32.mrb[0].mxu0
    %v677 = vadd.f32 %v532, %v676
    %v678 = vpop.f32.mrb[0].mxu0
    %679 = vmatprep.mubr.bf16.mxu0 0
    %680 = vmatmul.mubr.bf16.gmra.mrb[0].mxu0 %v379
    %v681 = vpop.f32.mrb[0].mxu0
    %v682 = vadd.f32 %v537, %v681
    %v683 = vpop.f32.mrb[0].mxu0
    %v684 = vpop.f32.mrb[0].mxu0
    %v685 = vadd.f32 %v540, %v684
    %v686 = vpop.f32.mrb[0].mxu0
    %687 = vmatprep.mubr.bf16.mxu0 0
    %688 = vmatmul.mubr.bf16.gmra.mrb[0].mxu0 %v380
    %v689 = vpop.f32.mrb[0].mxu0
    %v690 = vadd.f32 %v545, %v689
    %v691 = vpop.f32.mrb[0].mxu0
    %v692 = vpop.f32.mrb[0].mxu0
    %v693 = vadd.f32 %v548, %v692
    %v694 = vpop.f32.mrb[0].mxu0
    %695 = vmatprep.mubr.bf16.mxu0 0
    %696 = vmatmul.mubr.bf16.gmra.mrb[0].mxu0 %v381
    %v697 = vpop.f32.mrb[0].mxu0
    %v698 = vadd.f32 %v553, %v697
    %v699 = vpop.f32.mrb[0].mxu0
    %v700 = vpop.f32.mrb[0].mxu0
    %v701 = vadd.f32 %v556, %v700
    %v702 = vpop.f32.mrb[0].mxu0
    %703 = vdwg.mxu0
    %v704 = vld [vmem:[%s5] sm:$0x1]
    %v706 = vlaneseq
    %v707 = vshrl.u32 %v706, 7
    %v708 = vsub.s32 0, %v707
    %v709 = vrot.slane %v704, %v708
    %v711 = vadd.f32 %v642, %v709
    %v712 = vadd.f32 %v645, %v709
    %v713 = vadd.f32 %v650, %v709
    %v714 = vadd.f32 %v653, %v709
    %v715 = vadd.f32 %v658, %v709
    %v716 = vadd.f32 %v661, %v709
    %v717 = vadd.f32 %v666, %v709
    %v718 = vadd.f32 %v669, %v709
    %v719 = vadd.f32 %v674, %v709
    %v720 = vadd.f32 %v677, %v709
    %v721 = vadd.f32 %v682, %v709
    %v722 = vadd.f32 %v685, %v709
    %v723 = vadd.f32 %v690, %v709
    %v724 = vadd.f32 %v693, %v709
    %v725 = vadd.f32 %v698, %v709
    %v726 = vadd.f32 %v701, %v709
    %v727 = vmax.f32 %v711, 0.0
    %v728 = vmax.f32 %v712, 0.0
    %v729 = vmax.f32 %v713, 0.0
    %v730 = vmax.f32 %v714, 0.0
    %v731 = vmax.f32 %v715, 0.0
    %v732 = vmax.f32 %v716, 0.0
    %v733 = vmax.f32 %v717, 0.0
    %v734 = vmax.f32 %v718, 0.0
    %v735 = vmax.f32 %v719, 0.0
    %v736 = vmax.f32 %v720, 0.0
    %v737 = vmax.f32 %v721, 0.0
    %v738 = vmax.f32 %v722, 0.0
    %v739 = vmax.f32 %v723, 0.0
    %v740 = vmax.f32 %v724, 0.0
    %v741 = vmax.f32 %v725, 0.0
    %v742 = vmax.f32 %v726, 0.0
    %v743 = vpack.c.bf16 %v728, %v727
    %v744 = vpack.c.bf16 %v730, %v729
    %v745 = vpack.c.bf16 %v732, %v731
    %v746 = vpack.c.bf16 %v734, %v733
    %v747 = vpack.c.bf16 %v736, %v735
    %v748 = vpack.c.bf16 %v738, %v737
    %v749 = vpack.c.bf16 %v740, %v739
    %v750 = vpack.c.bf16 %v742, %v741
    %751 = vmatprep.subr.bf16.mxu0 0
    %752 = vmatpush1.bf16.msra.mxu0 %v743
    %753 = vmatprep.subr.bf16.mxu0 0
    %754 = vmatpush1.bf16.msra.mxu0 %v744
    %755 = vmatprep.subr.bf16.mxu0 0
    %756 = vmatpush1.bf16.msra.mxu0 %v745
    %757 = vmatprep.subr.bf16.mxu0 0
    %758 = vmatpush1.bf16.msra.mxu0 %v746
    %759 = vmatprep.subr.bf16.mxu0 0
    %760 = vmatpush1.bf16.msra.mxu0 %v747
    %761 = vmatprep.subr.bf16.mxu0 0
    %762 = vmatpush1.bf16.msra.mxu0 %v748
    %763 = vmatprep.subr.bf16.mxu0 0
    %764 = vmatpush1.bf16.msra.mxu0 %v749
    %765 = vmatprep.subr.bf16.mxu0 0
    %766 = vmatpush1.bf16.msra.mxu0 %v750
    %767 = vmatprep.subr.bf16.mxu0 0
    %768 = vmatpush1.bf16.msra.mxu0 0
    %769 = vmatprep.subr.bf16.mxu0 0
    %770 = vmatpush1.bf16.msra.mxu0 0
    %771 = vmatprep.subr.bf16.mxu0 0
    %772 = vmatpush1.bf16.msra.mxu0 0
    %773 = vmatprep.subr.bf16.mxu0 0
    %774 = vmatpush1.bf16.msra.mxu0 0
    %775 = vmatprep.subr.bf16.mxu0 0
    %776 = vmatpush1.bf16.msra.mxu0 0
    %777 = vmatprep.subr.bf16.mxu0 0
    %778 = vmatpush1.bf16.msra.mxu0 0
    %779 = vmatprep.subr.bf16.mxu0 0
    %780 = vmatpush1.bf16.msra.mxu0 0
    %781 = vmatprep.subr.bf16.mxu0 0
    %782 = vmatpush1.bf16.msra.mxu0 0
    %783 = vmatprep.mubr.bf16.mxu0 0
    %784 = vmatmul.mubr.bf16.gmra.mrb[0].mxu0 %v93
    %v785 = vpop.f32.mrb[0].mxu0
    %v786 = vadd.f32 0.0, %v785
    %v787 = vpop.f32.mrb[0].mxu0
    %v788 = vpop.f32.mrb[0].mxu0
    %v789 = vadd.f32 0.0, %v788
    %v790 = vpop.f32.mrb[0].mxu0
    %791 = vmatprep.mubr.bf16.mxu0 0
    %792 = vmatmul.mubr.bf16.gmra.mrb[0].mxu0 %v94
    %v793 = vpop.f32.mrb[0].mxu0
    %v794 = vadd.f32 0.0, %v793
    %v795 = vpop.f32.mrb[0].mxu0
    %v796 = vpop.f32.mrb[0].mxu0
    %v797 = vadd.f32 0.0, %v796
    %v798 = vpop.f32.mrb[0].mxu0
    %799 = vmatprep.mubr.bf16.mxu0 0
    %800 = vmatmul.mubr.bf16.gmra.mrb[0].mxu0 %v95
    %v801 = vpop.f32.mrb[0].mxu0
    %v802 = vadd.f32 0.0, %v801
    %v803 = vpop.f32.mrb[0].mxu0
    %v804 = vpop.f32.mrb[0].mxu0
    %v805 = vadd.f32 0.0, %v804
    %v806 = vpop.f32.mrb[0].mxu0
    %807 = vmatprep.mubr.bf16.mxu0 0
    %808 = vmatmul.mubr.bf16.gmra.mrb[0].mxu0 %v96
    %v809 = vpop.f32.mrb[0].mxu0
    %v810 = vadd.f32 0.0, %v809
    %v811 = vpop.f32.mrb[0].mxu0
    %v812 = vpop.f32.mrb[0].mxu0
    %v813 = vadd.f32 0.0, %v812
    %v814 = vpop.f32.mrb[0].mxu0
    %815 = vmatprep.mubr.bf16.mxu0 0
    %816 = vmatmul.mubr.bf16.gmra.mrb[0].mxu0 %v97
    %v817 = vpop.f32.mrb[0].mxu0
    %v818 = vadd.f32 0.0, %v817
    %v819 = vpop.f32.mrb[0].mxu0
    %v820 = vpop.f32.mrb[0].mxu0
    %v821 = vadd.f32 0.0, %v820
    %v822 = vpop.f32.mrb[0].mxu0
    %823 = vmatprep.mubr.bf16.mxu0 0
    %824 = vmatmul.mubr.bf16.gmra.mrb[0].mxu0 %v98
    %v825 = vpop.f32.mrb[0].mxu0
    %v826 = vadd.f32 0.0, %v825
    %v827 = vpop.f32.mrb[0].mxu0
    %v828 = vpop.f32.mrb[0].mxu0
    %v829 = vadd.f32 0.0, %v828
    %v830 = vpop.f32.mrb[0].mxu0
    %831 = vmatprep.mubr.bf16.mxu0 0
    %832 = vmatmul.mubr.bf16.gmra.mrb[0].mxu0 %v99
    %v833 = vpop.f32.mrb[0].mxu0
    %v834 = vadd.f32 0.0, %v833
    %v835 = vpop.f32.mrb[0].mxu0
    %v836 = vpop.f32.mrb[0].mxu0
    %v837 = vadd.f32 0.0, %v836
    %v838 = vpop.f32.mrb[0].mxu0
    %839 = vmatprep.mubr.bf16.mxu0 0
    %840 = vmatmul.mubr.bf16.gmra.mrb[0].mxu0 %v100
    %v841 = vpop.f32.mrb[0].mxu0
    %v842 = vadd.f32 0.0, %v841
    %v843 = vpop.f32.mrb[0].mxu0
    %v844 = vpop.f32.mrb[0].mxu0
    %v845 = vadd.f32 0.0, %v844
    %v846 = vpop.f32.mrb[0].mxu0
    %847 = vdwg.mxu0
    %v848 = vmul.f32 %v786, %v281
    %v849 = vmul.f32 %v789, %v286
    %v850 = vmul.f32 %v794, %v291
    %v851 = vmul.f32 %v797, %v296
    %v852 = vmul.f32 %v802, %v301
    %v853 = vmul.f32 %v805, %v306
    %v854 = vmul.f32 %v810, %v311
    %v855 = vmul.f32 %v813, %v316
    %v856 = vmul.f32 %v818, %v321
    %v857 = vmul.f32 %v821, %v326
    %v858 = vmul.f32 %v826, %v331
    %v859 = vmul.f32 %v829, %v336
    %v860 = vmul.f32 %v834, %v341
    %v861 = vmul.f32 %v837, %v346
    %v862 = vmul.f32 %v842, %v351
    %v863 = vmul.f32 %v845, %v356
    %v864 = vpack.c.bf16 %v849, %v848
    %v865 = vpack.c.bf16 %v851, %v850
    %v866 = vpack.c.bf16 %v853, %v852
    %v867 = vpack.c.bf16 %v855, %v854
    %v868 = vpack.c.bf16 %v857, %v856
    %v869 = vpack.c.bf16 %v859, %v858
    %v870 = vpack.c.bf16 %v861, %v860
    %v871 = vpack.c.bf16 %v863, %v862
    %v872 = vld [vmem:[#allocation7] sm:$0xf]
    %v873 = vld [vmem:[#allocation7 + $0x4] sm:$0xf]
    %v874 = vld [vmem:[#allocation7 + $0x8] sm:$0xf]
    %v875 = vld [vmem:[#allocation7 + $0xc] sm:$0xf]
    %v876 = vld [vmem:[#allocation7 + $0x10] sm:$0xf]
    %v877 = vld [vmem:[#allocation7 + $0x14] sm:$0xf]
    %v878 = vld [vmem:[#allocation7 + $0x18] sm:$0xf]
    %v879 = vld [vmem:[#allocation7 + $0x1c] sm:$0xf]
    %v880 = vld [vmem:[#allocation7 + $0x20] sm:$0xf]
    %v881 = vld [vmem:[#allocation7 + $0x24] sm:$0xf]
    %v882 = vld [vmem:[#allocation7 + $0x28] sm:$0xf]
    %v883 = vld [vmem:[#allocation7 + $0x2c] sm:$0xf]
    %v884 = vld [vmem:[#allocation7 + $0x30] sm:$0xf]
    %v885 = vld [vmem:[#allocation7 + $0x34] sm:$0xf]
    %v886 = vld [vmem:[#allocation7 + $0x38] sm:$0xf]
    %v887 = vld [vmem:[#allocation7 + $0x3c] sm:$0xf]
    %v888 = vld [vmem:[#allocation8] sm:$0xf]
    %v889 = vld [vmem:[#allocation8 + $0x4] sm:$0xf]
    %v890 = vld [vmem:[#allocation8 + $0x8] sm:$0xf]
    %v891 = vld [vmem:[#allocation8 + $0xc] sm:$0xf]
    %v892 = vld [vmem:[#allocation8 + $0x10] sm:$0xf]
    %v893 = vld [vmem:[#allocation8 + $0x14] sm:$0xf]
    %v894 = vld [vmem:[#allocation8 + $0x18] sm:$0xf]
    %v895 = vld [vmem:[#allocation8 + $0x1c] sm:$0xf]
    %v896 = vld [vmem:[#allocation8 + $0x20] sm:$0xf]
    %v897 = vld [vmem:[#allocation8 + $0x24] sm:$0xf]
    %v898 = vld [vmem:[#allocation8 + $0x28] sm:$0xf]
    %v899 = vld [vmem:[#allocation8 + $0x2c] sm:$0xf]
    %v900 = vld [vmem:[#allocation8 + $0x30] sm:$0xf]
    %v901 = vld [vmem:[#allocation8 + $0x34] sm:$0xf]
    %v902 = vld [vmem:[#allocation8 + $0x38] sm:$0xf]
    %v903 = vld [vmem:[#allocation8 + $0x3c] sm:$0xf]
    %v920 = vunpack.c.l.b16 %v888
    %v921 = vunpack.c.l.b16 %v889
    %v922 = vunpack.c.l.b16 %v890
    %v923 = vunpack.c.l.b16 %v891
    %v924 = vunpack.c.l.b16 %v892
    %v925 = vunpack.c.l.b16 %v893
    %v926 = vunpack.c.l.b16 %v894
    %v927 = vunpack.c.l.b16 %v895
    %v928 = vunpack.c.l.b16 %v896
    %v929 = vunpack.c.l.b16 %v897
    %v930 = vunpack.c.l.b16 %v898
    %v931 = vunpack.c.l.b16 %v899
    %v932 = vunpack.c.l.b16 %v900
    %v933 = vunpack.c.l.b16 %v901
    %v934 = vunpack.c.l.b16 %v902
    %v935 = vunpack.c.l.b16 %v903
    %v936 = vpack.c.b16 %v921, %v920
    %v937 = vpack.c.b16 %v923, %v922
    %v938 = vpack.c.b16 %v925, %v924
    %v939 = vpack.c.b16 %v927, %v926
    %v940 = vpack.c.b16 %v929, %v928
    %v941 = vpack.c.b16 %v931, %v930
    %v942 = vpack.c.b16 %v933, %v932
    %v943 = vpack.c.b16 %v935, %v934
    %952 = vmatprep.subr.bf16.mxu0 0
    %953 = vmatpush1.bf16.msra.mxu0 %v936
    %954 = vmatprep.subr.bf16.mxu0 0
    %955 = vmatpush1.bf16.msra.mxu0 %v937
    %956 = vmatprep.subr.bf16.mxu0 0
    %957 = vmatpush1.bf16.msra.mxu0 %v938
    %958 = vmatprep.subr.bf16.mxu0 0
    %959 = vmatpush1.bf16.msra.mxu0 %v939
    %960 = vmatprep.subr.bf16.mxu0 0
    %961 = vmatpush1.bf16.msra.mxu0 %v940
    %962 = vmatprep.subr.bf16.mxu0 0
    %963 = vmatpush1.bf16.msra.mxu0 %v941
    %964 = vmatprep.subr.bf16.mxu0 0
    %965 = vmatpush1.bf16.msra.mxu0 %v942
    %966 = vmatprep.subr.bf16.mxu0 0
    %967 = vmatpush1.bf16.msra.mxu0 %v943
    %968 = vmatprep.subr.bf16.mxu0 0
    %969 = vmatpush1.bf16.msra.mxu0 0
    %970 = vmatprep.subr.bf16.mxu0 0
    %971 = vmatpush1.bf16.msra.mxu0 0
    %972 = vmatprep.subr.bf16.mxu0 0
    %973 = vmatpush1.bf16.msra.mxu0 0
    %974 = vmatprep.subr.bf16.mxu0 0
    %975 = vmatpush1.bf16.msra.mxu0 0
    %976 = vmatprep.subr.bf16.mxu0 0
    %977 = vmatpush1.bf16.msra.mxu0 0
    %978 = vmatprep.subr.bf16.mxu0 0
    %979 = vmatpush1.bf16.msra.mxu0 0
    %980 = vmatprep.subr.bf16.mxu0 0
    %981 = vmatpush1.bf16.msra.mxu0 0
    %982 = vmatprep.subr.bf16.mxu0 0
    %983 = vmatpush1.bf16.msra.mxu0 0
    %984 = vmatprep.mubr.bf16.mxu0 0
    %985 = vmatmul.mubr.bf16.gmra.mrb[0].mxu0 %v743
    %v986 = vpop.f32.mrb[0].mxu0
    %v987 = vadd.f32 0.0, %v986
    %v988 = vpop.f32.mrb[0].mxu0
    %v989 = vpop.f32.mrb[0].mxu0
    %v990 = vadd.f32 0.0, %v989
    %v991 = vpop.f32.mrb[0].mxu0
    %992 = vmatprep.mubr.bf16.mxu0 0
    %993 = vmatmul.mubr.bf16.gmra.mrb[0].mxu0 %v744
    %v994 = vpop.f32.mrb[0].mxu0
    %v995 = vadd.f32 0.0, %v994
    %v996 = vpop.f32.mrb[0].mxu0
    %v997 = vpop.f32.mrb[0].mxu0
    %v998 = vadd.f32 0.0, %v997
    %v999 = vpop.f32.mrb[0].mxu0
    %1000 = vmatprep.mubr.bf16.mxu0 0
    %1001 = vmatmul.mubr.bf16.gmra.mrb[0].mxu0 %v745
    %v1002 = vpop.f32.mrb[0].mxu0
    %v1003 = vadd.f32 0.0, %v1002
    %v1004 = vpop.f32.mrb[0].mxu0
    %v1005 = vpop.f32.mrb[0].mxu0
    %v1006 = vadd.f32 0.0, %v1005
    %v1007 = vpop.f32.mrb[0].mxu0
    %1008 = vmatprep.mubr.bf16.mxu0 0
    %1009 = vmatmul.mubr.bf16.gmra.mrb[0].mxu0 %v746
    %v1010 = vpop.f32.mrb[0].mxu0
    %v1011 = vadd.f32 0.0, %v1010
    %v1012 = vpop.f32.mrb[0].mxu0
    %v1013 = vpop.f32.mrb[0].mxu0
    %v1014 = vadd.f32 0.0, %v1013
    %v1015 = vpop.f32.mrb[0].mxu0
    %1016 = vmatprep.mubr.bf16.mxu0 0
    %1017 = vmatmul.mubr.bf16.gmra.mrb[0].mxu0 %v747
    %v1018 = vpop.f32.mrb[0].mxu0
    %v1019 = vadd.f32 0.0, %v1018
    %v1020 = vpop.f32.mrb[0].mxu0
    %v1021 = vpop.f32.mrb[0].mxu0
    %v1022 = vadd.f32 0.0, %v1021
    %v1023 = vpop.f32.mrb[0].mxu0
    %1024 = vmatprep.mubr.bf16.mxu0 0
    %1025 = vmatmul.mubr.bf16.gmra.mrb[0].mxu0 %v748
    %v1026 = vpop.f32.mrb[0].mxu0
    %v1027 = vadd.f32 0.0, %v1026
    %v1028 = vpop.f32.mrb[0].mxu0
    %v1029 = vpop.f32.mrb[0].mxu0
    %v1030 = vadd.f32 0.0, %v1029
    %v1031 = vpop.f32.mrb[0].mxu0
    %1032 = vmatprep.mubr.bf16.mxu0 0
    %1033 = vmatmul.mubr.bf16.gmra.mrb[0].mxu0 %v749
    %v1034 = vpop.f32.mrb[0].mxu0
    %v1035 = vadd.f32 0.0, %v1034
    %v1036 = vpop.f32.mrb[0].mxu0
    %v1037 = vpop.f32.mrb[0].mxu0
    %v1038 = vadd.f32 0.0, %v1037
    %v1039 = vpop.f32.mrb[0].mxu0
    %1040 = vmatprep.mubr.bf16.mxu0 0
    %1041 = vmatmul.mubr.bf16.gmra.mrb[0].mxu0 %v750
    %v1042 = vpop.f32.mrb[0].mxu0
    %v1043 = vadd.f32 0.0, %v1042
    %v1044 = vpop.f32.mrb[0].mxu0
    %v1045 = vpop.f32.mrb[0].mxu0
    %v1046 = vadd.f32 0.0, %v1045
    %v1047 = vpop.f32.mrb[0].mxu0
    %1048 = vdwg.mxu0
    %v1065 = vunpack.c.l.b16 %v872
    %v1066 = vunpack.c.l.b16 %v873
    %v1067 = vunpack.c.l.b16 %v874
    %v1068 = vunpack.c.l.b16 %v875
    %v1069 = vunpack.c.l.b16 %v876
    %v1070 = vunpack.c.l.b16 %v877
    %v1071 = vunpack.c.l.b16 %v878
    %v1072 = vunpack.c.l.b16 %v879
    %v1073 = vunpack.c.l.b16 %v880
    %v1074 = vunpack.c.l.b16 %v881
    %v1075 = vunpack.c.l.b16 %v882
    %v1076 = vunpack.c.l.b16 %v883
    %v1077 = vunpack.c.l.b16 %v884
    %v1078 = vunpack.c.l.b16 %v885
    %v1079 = vunpack.c.l.b16 %v886
    %v1080 = vunpack.c.l.b16 %v887
    %v1081 = vpack.c.b16 %v1066, %v1065
    %v1082 = vpack.c.b16 %v1068, %v1067
    %v1083 = vpack.c.b16 %v1070, %v1069
    %v1084 = vpack.c.b16 %v1072, %v1071
    %v1085 = vpack.c.b16 %v1074, %v1073
    %v1086 = vpack.c.b16 %v1076, %v1075
    %v1087 = vpack.c.b16 %v1078, %v1077
    %v1088 = vpack.c.b16 %v1080, %v1079
    %1097 = vmatprep.subr.bf16.mxu0 0
    %1098 = vmatpush1.bf16.msra.mxu0 %v1081
    %1099 = vmatprep.subr.bf16.mxu0 0
    %1100 = vmatpush1.bf16.msra.mxu0 %v1082
    %1101 = vmatprep.subr.bf16.mxu0 0
    %1102 = vmatpush1.bf16.msra.mxu0 %v1083
    %1103 = vmatprep.subr.bf16.mxu0 0
    %1104 = vmatpush1.bf16.msra.mxu0 %v1084
    %1105 = vmatprep.subr.bf16.mxu0 0
    %1106 = vmatpush1.bf16.msra.mxu0 %v1085
    %1107 = vmatprep.subr.bf16.mxu0 0
    %1108 = vmatpush1.bf16.msra.mxu0 %v1086
    %1109 = vmatprep.subr.bf16.mxu0 0
    %1110 = vmatpush1.bf16.msra.mxu0 %v1087
    %1111 = vmatprep.subr.bf16.mxu0 0
    %1112 = vmatpush1.bf16.msra.mxu0 %v1088
    %1113 = vmatprep.subr.bf16.mxu0 0
    %1114 = vmatpush1.bf16.msra.mxu0 0
    %1115 = vmatprep.subr.bf16.mxu0 0
    %1116 = vmatpush1.bf16.msra.mxu0 0
    %1117 = vmatprep.subr.bf16.mxu0 0
    %1118 = vmatpush1.bf16.msra.mxu0 0
    %1119 = vmatprep.subr.bf16.mxu0 0
    %1120 = vmatpush1.bf16.msra.mxu0 0
    %1121 = vmatprep.subr.bf16.mxu0 0
    %1122 = vmatpush1.bf16.msra.mxu0 0
    %1123 = vmatprep.subr.bf16.mxu0 0
    %1124 = vmatpush1.bf16.msra.mxu0 0
    %1125 = vmatprep.subr.bf16.mxu0 0
    %1126 = vmatpush1.bf16.msra.mxu0 0
    %1127 = vmatprep.subr.bf16.mxu0 0
    %1128 = vmatpush1.bf16.msra.mxu0 0
    %1129 = vmatprep.mubr.bf16.mxu0 0
    %1130 = vmatmul.mubr.bf16.gmra.mrb[0].mxu0 %v864
    %v1131 = vpop.f32.mrb[0].mxu0
    %v1132 = vadd.f32 %v987, %v1131
    %v1133 = vpop.f32.mrb[0].mxu0
    %v1134 = vpop.f32.mrb[0].mxu0
    %v1135 = vadd.f32 %v990, %v1134
    %v1136 = vpop.f32.mrb[0].mxu0
    %1137 = vmatprep.mubr.bf16.mxu0 0
    %1138 = vmatmul.mubr.bf16.gmra.mrb[0].mxu0 %v865
    %v1139 = vpop.f32.mrb[0].mxu0
    %v1140 = vadd.f32 %v995, %v1139
    %v1141 = vpop.f32.mrb[0].mxu0
    %v1142 = vpop.f32.mrb[0].mxu0
    %v1143 = vadd.f32 %v998, %v1142
    %v1144 = vpop.f32.mrb[0].mxu0
    %1145 = vmatprep.mubr.bf16.mxu0 0
    %1146 = vmatmul.mubr.bf16.gmra.mrb[0].mxu0 %v866
    %v1147 = vpop.f32.mrb[0].mxu0
    %v1148 = vadd.f32 %v1003, %v1147
    %v1149 = vpop.f32.mrb[0].mxu0
    %v1150 = vpop.f32.mrb[0].mxu0
    %v1151 = vadd.f32 %v1006, %v1150
    %v1152 = vpop.f32.mrb[0].mxu0
    %1153 = vmatprep.mubr.bf16.mxu0 0
    %1154 = vmatmul.mubr.bf16.gmra.mrb[0].mxu0 %v867
    %v1155 = vpop.f32.mrb[0].mxu0
    %v1156 = vadd.f32 %v1011, %v1155
    %v1157 = vpop.f32.mrb[0].mxu0
    %v1158 = vpop.f32.mrb[0].mxu0
    %v1159 = vadd.f32 %v1014, %v1158
    %v1160 = vpop.f32.mrb[0].mxu0
    %1161 = vmatprep.mubr.bf16.mxu0 0
    %1162 = vmatmul.mubr.bf16.gmra.mrb[0].mxu0 %v868
    %v1163 = vpop.f32.mrb[0].mxu0
    %v1164 = vadd.f32 %v1019, %v1163
    %v1165 = vpop.f32.mrb[0].mxu0
    %v1166 = vpop.f32.mrb[0].mxu0
    %v1167 = vadd.f32 %v1022, %v1166
    %v1168 = vpop.f32.mrb[0].mxu0
    %1169 = vmatprep.mubr.bf16.mxu0 0
    %1170 = vmatmul.mubr.bf16.gmra.mrb[0].mxu0 %v869
    %v1171 = vpop.f32.mrb[0].mxu0
    %v1172 = vadd.f32 %v1027, %v1171
    %v1173 = vpop.f32.mrb[0].mxu0
    %v1174 = vpop.f32.mrb[0].mxu0
    %v1175 = vadd.f32 %v1030, %v1174
    %v1176 = vpop.f32.mrb[0].mxu0
    %1177 = vmatprep.mubr.bf16.mxu0 0
    %1178 = vmatmul.mubr.bf16.gmra.mrb[0].mxu0 %v870
    %v1179 = vpop.f32.mrb[0].mxu0
    %v1180 = vadd.f32 %v1035, %v1179
    %v1181 = vpop.f32.mrb[0].mxu0
    %v1182 = vpop.f32.mrb[0].mxu0
    %v1183 = vadd.f32 %v1038, %v1182
    %v1184 = vpop.f32.mrb[0].mxu0
    %1185 = vmatprep.mubr.bf16.mxu0 0
    %1186 = vmatmul.mubr.bf16.gmra.mrb[0].mxu0 %v871
    %v1187 = vpop.f32.mrb[0].mxu0
    %v1188 = vadd.f32 %v1043, %v1187
    %v1189 = vpop.f32.mrb[0].mxu0
    %v1190 = vpop.f32.mrb[0].mxu0
    %v1191 = vadd.f32 %v1046, %v1190
    %v1192 = vpop.f32.mrb[0].mxu0
    %1193 = vdwg.mxu0
    %v1194 = vld [vmem:[%s8] sm:$0x1]
    %v1196 = vlaneseq
    %v1197 = vshrl.u32 %v1196, 7
    %v1198 = vsub.s32 0, %v1197
    %v1199 = vrot.slane %v1194, %v1198
    %v1201 = vadd.f32 %v1132, %v1199
    %v1202 = vadd.f32 %v1135, %v1199
    %v1203 = vadd.f32 %v1140, %v1199
    %v1204 = vadd.f32 %v1143, %v1199
    %v1205 = vadd.f32 %v1148, %v1199
    %v1206 = vadd.f32 %v1151, %v1199
    %v1207 = vadd.f32 %v1156, %v1199
    %v1208 = vadd.f32 %v1159, %v1199
    %v1209 = vadd.f32 %v1164, %v1199
    %v1210 = vadd.f32 %v1167, %v1199
    %v1211 = vadd.f32 %v1172, %v1199
    %v1212 = vadd.f32 %v1175, %v1199
    %v1213 = vadd.f32 %v1180, %v1199
    %v1214 = vadd.f32 %v1183, %v1199
    %v1215 = vadd.f32 %v1188, %v1199
    %v1216 = vadd.f32 %v1191, %v1199
    %1217 = vst [vmem:[#allocation10] sm:$0xff] %v1201
    %1218 = vst [vmem:[#allocation10 + $0x8] sm:$0xff] %v1202
    %1219 = vst [vmem:[#allocation10 + $0x10] sm:$0xff] %v1203
    %1220 = vst [vmem:[#allocation10 + $0x18] sm:$0xff] %v1204
    %1221 = vst [vmem:[#allocation10 + $0x20] sm:$0xff] %v1205
    %1222 = vst [vmem:[#allocation10 + $0x28] sm:$0xff] %v1206
    %1223 = vst [vmem:[#allocation10 + $0x30] sm:$0xff] %v1207
    %1224 = vst [vmem:[#allocation10 + $0x38] sm:$0xff] %v1208
    %1225 = vst [vmem:[#allocation10 + $0x40] sm:$0xff] %v1209
    %1226 = vst [vmem:[#allocation10 + $0x48] sm:$0xff] %v1210
    %1227 = vst [vmem:[#allocation10 + $0x50] sm:$0xff] %v1211
    %1228 = vst [vmem:[#allocation10 + $0x58] sm:$0xff] %v1212
    %1229 = vst [vmem:[#allocation10 + $0x60] sm:$0xff] %v1213
    %1230 = vst [vmem:[#allocation10 + $0x68] sm:$0xff] %v1214
    %1231 = vst [vmem:[#allocation10 + $0x70] sm:$0xff] %v1215
    %1232 = vst [vmem:[#allocation10 + $0x78] sm:$0xff] %v1216
    // Predicated region
    $region54: #{tpu_custom_call.1} parent=1 // pred_check
      _
    $region55: #{tpu_custom_call.1} parent=1 // pred_check_branch
      %1234 = sbr.rel (0) target = $region57
    $region56: #{tpu_custom_call.1} parent=1 // pred_region
      %s1236 = ssub.s32 2048, 2048
      %1237 = vsyncadd [#allocation4], %s1236
      %s1238 = sshll.u32 [#allocation10], 4
      %s1239 = int_to_ptr.vmem [resolvable:$true] %s1238
      %1244 = dma.vmem_to_hbm [thread:$0]  %s1239, 2048, %s9, [#allocation4], 128, 128, 8
    $region57: #{tpu_custom_call.1} parent=1 // pred_fallthru
      _
    // Predicated region
    $region58: #{tpu_custom_call.1} parent=1 // pred_check
      _
    $region59: #{tpu_custom_call.1} parent=1 // pred_check_branch
      %1246 = sbr.rel (0) target = $region61
    $region60: #{tpu_custom_call.1} parent=1 // pred_region
      %1247 = dma.done [#allocation4], 2048
    $region61: #{tpu_custom_call.1} parent=1 // pred_fallthru
      _
    %1248 = vsyncpa [#allocation3], 1
    %1249 = vsyncpa [#allocation6], 1
    %1250 = vsyncpa [#allocation9], 1
    %1251 = vsyncpa [#allocation4], 1

</llo_original>
